<compile_context>
chip_gen: v7x
topology: tpu7x:2x2x1
jax: 0.10.0
libtpu: 0.0.40
codegen_flags: <defaults>
</compile_context>

<pallas_src>
import jax
import jax.numpy as jnp
from jax import lax
from jax.experimental import pallas as pl
from jax.experimental.pallas import tpu as pltpu


# ---------------------------------------------------------------------------
# Fused Pallas kernel: in-kernel patch extraction (4 shifted matmuls on the
# space-to-depth image) + BN bias + SiLU -> 1x1 conv + BN bias + SiLU ->
# global average pool -> Linear head.  One grid step == one image.
# ---------------------------------------------------------------------------
def _make_fused_kernel(Ho, Wo, C4):
    hw = Ho * Wo

    def kernel(xs_ref, w1_ref, b1_ref, w2_ref, b2_ref, wfc_ref, bfc_ref,
               out_ref):
        c1 = w1_ref.shape[-1]

        # ---- stem 3x3 s2 conv as 4 shifted sub-matmuls (im2col-free) ------
        # xs_ref is the per-image space-to-depth block (Hs, Ws, 4*Cin) bf16;
        # output pixel (i, j) reads s2d pixels (i+di, j+dj), di,dj in {0,1},
        # so each shift is a static unit-stride slice (no gathers/strides).
        acc = jnp.zeros((hw, c1), jnp.float32)
        for di in range(2):
            for dj in range(2):
                xs = xs_ref[di:di + Ho, dj:dj + Wo, :]       # (Ho, Wo, C4)
                xs = xs.reshape(hw, C4)                      # (Ho*Wo, C4)
                acc = acc + jnp.dot(xs, w1_ref[2 * di + dj],
                                    preferred_element_type=jnp.float32)

        # folded-BN bias + SiLU (f32 epilogue)
        h = acc + b1_ref[...]
        h = h * jax.nn.sigmoid(h)

        # ---- 1x1 pointwise conv + folded-BN bias + SiLU --------------------
        h = jnp.dot(h.astype(w2_ref.dtype), w2_ref[...],
                    preferred_element_type=jnp.float32)
        h = h + b2_ref[...]
        h = h * jax.nn.sigmoid(h)

        # ---- global average pool (exact Ho*Wo rows, no masking needed) -----
        feats = jnp.sum(h, axis=0, keepdims=True) * (1.0 / hw)   # (1, C2)

        # ---- myfc Linear head ----------------------------------------------
        out = jnp.dot(feats, wfc_ref[...],
                      preferred_element_type=jnp.float32) + bfc_ref[...]
        out_ref[...] = out

    return kernel


def fused_backbone_head(xs, w1s, b1, w2, b2, wfc, bfc, H, W):
    """xs: (B, Hs, Ws, 4*Cin) bf16 space-to-depth image -> (B, out_dim) f32."""
    B, Hs, Ws, C4 = xs.shape
    Ho, Wo = H // 2, W // 2
    C1 = w1s.shape[-1]
    C2 = w2.shape[-1]
    out_dim = wfc.shape[-1]
    hw = Ho * Wo

    kernel = _make_fused_kernel(Ho, Wo, C4)

    flops = B * (2 * hw * 4 * C4 * C1 + 2 * hw * C1 * C2 + 2 * C2 * out_dim)
    transcendentals = B * hw * (C1 + C2)
    bytes_accessed = (xs.size * xs.dtype.itemsize
                      + (w1s.size + w2.size) * 2
                      + (b1.size + b2.size + wfc.size + bfc.size) * 4
                      + B * out_dim * 4)

    out = pl.pallas_call(
        kernel,
        out_shape=jax.ShapeDtypeStruct((B, 1, out_dim), jnp.float32),
        grid_spec=pltpu.PrefetchScalarGridSpec(
            num_scalar_prefetch=0,
            grid=(B,),
            in_specs=[
                # per-image space-to-depth block (batch dim squeezed out)
                pl.BlockSpec((None, Hs, Ws, C4), lambda b: (b, 0, 0, 0)),
                # small weights/biases: constant index_map -> fetched once,
                # resident in VMEM for the whole grid.
                pl.BlockSpec((4, C4, C1), lambda b: (0, 0, 0)),
                pl.BlockSpec((1, C1), lambda b: (0, 0)),
                pl.BlockSpec((C1, C2), lambda b: (0, 0)),
                pl.BlockSpec((1, C2), lambda b: (0, 0)),
                pl.BlockSpec((C2, out_dim), lambda b: (0, 0)),
                pl.BlockSpec((1, out_dim), lambda b: (0, 0)),
            ],
            out_specs=pl.BlockSpec((None, 1, out_dim), lambda b: (b, 0, 0)),
        ),
        compiler_params=pltpu.CompilerParams(
            dimension_semantics=("parallel",)),
        cost_estimate=pl.CostEstimate(
            flops=flops, transcendentals=transcendentals,
            bytes_accessed=bytes_accessed),
    )(xs, w1s, b1, w2, b2, wfc, bfc)
    return out.reshape(B, out_dim)


# ---------------------------------------------------------------------------
# enetv2 forward
# ---------------------------------------------------------------------------
def enetv2_forward(x_nchw, params):
    B, Cin, H, W = x_nchw.shape
    assert H % 2 == 0 and W % 2 == 0, "stem stride-2 path assumes even H, W"
    c_stem = params["w_stem"].shape[0]
    in_ch = params["w_pw"].shape[0]
    out_dim = params["w_fc"].shape[0]

    # --- host: NCHW -> NHWC, pad=1, lossless space-to-depth(2), bf16 --------
    # (single fused XLA pass over the raw image; NO im2col replication)
    x = jnp.transpose(x_nchw, (0, 2, 3, 1))
    xp = jnp.pad(x, ((0, 0), (1, 1), (1, 1), (0, 0)))
    Hs, Ws = (H + 2) // 2, (W + 2) // 2
    xs = xp.reshape(B, Hs, 2, Ws, 2, Cin)
    xs = jnp.transpose(xs, (0, 1, 3, 2, 4, 5)).reshape(B, Hs, Ws, 4 * Cin)
    xs = xs.astype(jnp.bfloat16)

    # --- host: fold inference BatchNorm into weights; build the phase- ------
    # --- decomposed stem weight blocks for the 4 shifted sub-matmuls --------
    # w_stem is PyTorch layout (Cout, Cin, kH, kW); phase channel order in the
    # s2d tensor is ((pi*2 + pj)*Cin + c).
    w_pt = params["w_stem"] * params["bn1_scale"][:, None, None, None]
    w1s = jnp.zeros((2, 2, 4 * Cin, c_stem), jnp.float32)
    for di in range(2):
        for dj in range(2):
            for pi in range(2):
                for pj in range(2):
                    ki, kj = 2 * di + pi, 2 * dj + pj
                    if ki < 3 and kj < 3:
                        blk = jnp.transpose(w_pt[:, :, ki, kj])   # (Cin, Cout)
                        ch = (pi * 2 + pj) * Cin
                        w1s = w1s.at[di, dj, ch:ch + Cin, :].set(blk)
    w1s = w1s.reshape(4, 4 * Cin, c_stem).astype(jnp.bfloat16)
    b1 = params["bn1_bias"].reshape(1, c_stem).astype(jnp.float32)

    # 1x1 pointwise conv (Cout, Cin) -> matmul matrix (Cin, Cout), BN folded
    w2 = (params["w_pw"].T * params["bn2_scale"][None, :]).astype(jnp.bfloat16)
    b2 = params["bn2_bias"].reshape(1, in_ch).astype(jnp.float32)

    # myfc: nn.Linear(in_ch, out_dim); tiny head matmul stays f32
    wfc = params["w_fc"].T.astype(jnp.float32)
    bfc = params["b_fc"].reshape(1, out_dim).astype(jnp.float32)

    # x.squeeze(-1).squeeze(-1): the GAP output is already (B, in_ch) in-kernel.
    # self.dropout: identity in eval mode.
    # Single fused Pallas kernel: stem conv -> pointwise conv -> GAP -> myfc.
    return fused_backbone_head(xs, w1s, b1, w2, b2, wfc, bfc, H, W)


# ---------------------------------------------------------------------------
# Pure-JAX reference (independent path via XLA conv) for a sanity check.
# ---------------------------------------------------------------------------
def reference_forward(x_nchw, params):
    x = jnp.transpose(x_nchw, (0, 2, 3, 1)).astype(jnp.float32)
    w = jnp.transpose(
        params["w_stem"] * params["bn1_scale"][:, None, None, None],
        (2, 3, 1, 0))                                          # HWIO
    h = lax.conv_general_dilated(x, w, window_strides=(2, 2),
                                 padding=((1, 1), (1, 1)),
                                 dimension_numbers=("NHWC", "HWIO", "NHWC"))
    h = h + params["bn1_bias"]
    h = h * jax.nn.sigmoid(h)
    w2 = params["w_pw"].T * params["bn2_scale"][None, :]
    h = jnp.einsum("bhwc,cd->bhwd", h, w2) + params["bn2_bias"]
    h = h * jax.nn.sigmoid(h)
    feats = jnp.mean(h, axis=(1, 2))
    return feats @ params["w_fc"].T + params["b_fc"]


def init_params(key, cin=3, c_stem=16, in_ch=32, out_dim=5):
    ks = jax.random.split(key, 8)
    # stem conv weight in PyTorch layout (Cout, Cin, kH, kW)
    w_stem = jax.random.normal(ks[0], (c_stem, cin, 3, 3), jnp.float32) * 0.1
    # folded inference BatchNorm (scale = gamma/sqrt(var+eps), bias = beta - mean*scale)
    bn1_scale = 1.0 + 0.05 * jax.random.normal(ks[1], (c_stem,), jnp.float32)
    bn1_bias = 0.05 * jax.random.normal(ks[2], (c_stem,), jnp.float32)
    # pointwise 1x1 conv weight (Cout, Cin)
    w_pw = jax.random.normal(ks[3], (in_ch, c_stem), jnp.float32) * 0.1
    bn2_scale = 1.0 + 0.05 * jax.random.normal(ks[4], (in_ch,), jnp.float32)
    bn2_bias = 0.05 * jax.random.normal(ks[5], (in_ch,), jnp.float32)
    # myfc: nn.Linear(in_ch, out_dim), weight (out_dim, in_ch)
    w_fc = jax.random.normal(ks[6], (out_dim, in_ch), jnp.float32) * 0.1
    b_fc = 0.05 * jax.random.normal(ks[7], (out_dim,), jnp.float32)
    return dict(
        w_stem=w_stem, bn1_scale=bn1_scale, bn1_bias=bn1_bias,
        w_pw=w_pw, bn2_scale=bn2_scale, bn2_bias=bn2_bias,
        w_fc=w_fc, b_fc=b_fc,
    )


if __name__ == "__main__":
    key = jax.random.PRNGKey(0)
    k_x, k_p = jax.random.split(key)
    # small NCHW input, matching the PyTorch module's convention (RGB images)
    x = jax.random.normal(k_x, (2, 3, 16, 16), jnp.float32)
    params = init_params(k_p)

    out = jax.jit(enetv2_forward)(x, params)
    out = jax.block_until_ready(out)
    assert out.shape == (2, 5) and out.dtype == jnp.float32

    # numerical sanity check vs. an independent XLA-conv reference
    # (bf16 MXU operands -> loose tolerance)
    ref = reference_forward(x, params)
    max_err = float(jnp.max(jnp.abs(out - ref)))
    assert max_err < 5e-2, f"mismatch vs reference: max abs err {max_err}"

    print("KERNEL_OK")
</pallas_src>

<mosaic_0001>
module attributes {stable_mosaic.version = 11 : i64} {
  func.func @kernel(%arg0: i32, %arg1: memref<1x9x9x12xbf16, #tpu.memory_space<vmem>>, %arg2: memref<4x12x16xbf16, #tpu.memory_space<vmem>>, %arg3: memref<1x16xf32, #tpu.memory_space<vmem>>, %arg4: memref<16x32xbf16, #tpu.memory_space<vmem>>, %arg5: memref<1x32xf32, #tpu.memory_space<vmem>>, %arg6: memref<32x5xf32, #tpu.memory_space<vmem>>, %arg7: memref<1x5xf32, #tpu.memory_space<vmem>>, %arg8: memref<1x1x5xf32, #tpu.memory_space<vmem>>) attributes {dimension_semantics = [#tpu.dimension_semantics<parallel>], iteration_bounds = array<i64: 2>, scalar_prefetch = 0 : i64, scratch_operands = 0 : i64, tpu.core_type = #tpu.core_type<tc>, window_params = [{transform_indices = @transform_0, window_bounds = array<i64: 1, 9, 9, 12>}, {pipeline_mode = #tpu.pipeline_mode<synchronous>, transform_indices = @transform_1, window_bounds = array<i64: 4, 12, 16>}, {pipeline_mode = #tpu.pipeline_mode<synchronous>, transform_indices = @transform_2, window_bounds = array<i64: 1, 16>}, {pipeline_mode = #tpu.pipeline_mode<synchronous>, transform_indices = @transform_3, window_bounds = array<i64: 16, 32>}, {pipeline_mode = #tpu.pipeline_mode<synchronous>, transform_indices = @transform_4, window_bounds = array<i64: 1, 32>}, {pipeline_mode = #tpu.pipeline_mode<synchronous>, transform_indices = @transform_5, window_bounds = array<i64: 32, 5>}, {pipeline_mode = #tpu.pipeline_mode<synchronous>, transform_indices = @transform_6, window_bounds = array<i64: 1, 5>}, {transform_indices = @transform_7, window_bounds = array<i64: 1, 1, 5>}]} {
    %cst = arith.constant 0.000000e+00 : f32
    %0 = vector.broadcast %cst : f32 to vector<64x16xf32>
    %c0 = arith.constant 0 : index
    %c0_0 = arith.constant 0 : index
    %c0_1 = arith.constant 0 : index
    %c0_2 = arith.constant 0 : index
    %1 = vector.load %arg1[%c0, %c0_0, %c0_1, %c0_2] : memref<1x9x9x12xbf16, #tpu.memory_space<vmem>>, vector<1x8x8x12xbf16>
    %2 = vector.shape_cast %1 : vector<1x8x8x12xbf16> to vector<8x8x12xbf16>
    %3 = vector.shape_cast %2 : vector<8x8x12xbf16> to vector<64x12xbf16>
    %c0_3 = arith.constant 0 : index
    %c0_4 = arith.constant 0 : index
    %c0_5 = arith.constant 0 : index
    %4 = vector.load %arg2[%c0_3, %c0_4, %c0_5] : memref<4x12x16xbf16, #tpu.memory_space<vmem>>, vector<1x12x16xbf16>
    %5 = vector.shape_cast %4 : vector<1x12x16xbf16> to vector<12x16xbf16>
    %cst_6 = arith.constant dense<0.000000e+00> : vector<64x16xf32>
    %6 = tpu.matmul %3, %5, %cst_6 {dimension_numbers = #tpu.dot_dimension_numbers<[1], [0], [0], [1], [0, 0, 1, 1], [], []>} : vector<64x12xbf16>, vector<12x16xbf16>, vector<64x16xf32> -> vector<64x16xf32>
    %7 = arith.addf %0, %6 : vector<64x16xf32>
    %c0_7 = arith.constant 0 : index
    %c0_8 = arith.constant 0 : index
    %c1 = arith.constant 1 : index
    %c0_9 = arith.constant 0 : index
    %8 = vector.load %arg1[%c0_7, %c0_8, %c1, %c0_9] : memref<1x9x9x12xbf16, #tpu.memory_space<vmem>>, vector<1x8x8x12xbf16>
    %9 = vector.shape_cast %8 : vector<1x8x8x12xbf16> to vector<8x8x12xbf16>
    %10 = vector.shape_cast %9 : vector<8x8x12xbf16> to vector<64x12xbf16>
    %c1_10 = arith.constant 1 : index
    %c0_11 = arith.constant 0 : index
    %c0_12 = arith.constant 0 : index
    %11 = vector.load %arg2[%c1_10, %c0_11, %c0_12] : memref<4x12x16xbf16, #tpu.memory_space<vmem>>, vector<1x12x16xbf16>
    %12 = vector.shape_cast %11 : vector<1x12x16xbf16> to vector<12x16xbf16>
    %cst_13 = arith.constant dense<0.000000e+00> : vector<64x16xf32>
    %13 = tpu.matmul %10, %12, %cst_13 {dimension_numbers = #tpu.dot_dimension_numbers<[1], [0], [0], [1], [0, 0, 1, 1], [], []>} : vector<64x12xbf16>, vector<12x16xbf16>, vector<64x16xf32> -> vector<64x16xf32>
    %14 = arith.addf %7, %13 : vector<64x16xf32>
    %c0_14 = arith.constant 0 : index
    %c1_15 = arith.constant 1 : index
    %c0_16 = arith.constant 0 : index
    %c0_17 = arith.constant 0 : index
    %15 = vector.load %arg1[%c0_14, %c1_15, %c0_16, %c0_17] : memref<1x9x9x12xbf16, #tpu.memory_space<vmem>>, vector<1x8x8x12xbf16>
    %16 = vector.shape_cast %15 : vector<1x8x8x12xbf16> to vector<8x8x12xbf16>
    %17 = vector.shape_cast %16 : vector<8x8x12xbf16> to vector<64x12xbf16>
    %c2 = arith.constant 2 : index
    %c0_18 = arith.constant 0 : index
    %c0_19 = arith.constant 0 : index
    %18 = vector.load %arg2[%c2, %c0_18, %c0_19] : memref<4x12x16xbf16, #tpu.memory_space<vmem>>, vector<1x12x16xbf16>
    %19 = vector.shape_cast %18 : vector<1x12x16xbf16> to vector<12x16xbf16>
    %cst_20 = arith.constant dense<0.000000e+00> : vector<64x16xf32>
    %20 = tpu.matmul %17, %19, %cst_20 {dimension_numbers = #tpu.dot_dimension_numbers<[1], [0], [0], [1], [0, 0, 1, 1], [], []>} : vector<64x12xbf16>, vector<12x16xbf16>, vector<64x16xf32> -> vector<64x16xf32>
    %21 = arith.addf %14, %20 : vector<64x16xf32>
    %c0_21 = arith.constant 0 : index
    %c1_22 = arith.constant 1 : index
    %c1_23 = arith.constant 1 : index
    %c0_24 = arith.constant 0 : index
    %22 = vector.load %arg1[%c0_21, %c1_22, %c1_23, %c0_24] : memref<1x9x9x12xbf16, #tpu.memory_space<vmem>>, vector<1x8x8x12xbf16>
    %23 = vector.shape_cast %22 : vector<1x8x8x12xbf16> to vector<8x8x12xbf16>
    %24 = vector.shape_cast %23 : vector<8x8x12xbf16> to vector<64x12xbf16>
    %c3 = arith.constant 3 : index
    %c0_25 = arith.constant 0 : index
    %c0_26 = arith.constant 0 : index
    %25 = vector.load %arg2[%c3, %c0_25, %c0_26] : memref<4x12x16xbf16, #tpu.memory_space<vmem>>, vector<1x12x16xbf16>
    %26 = vector.shape_cast %25 : vector<1x12x16xbf16> to vector<12x16xbf16>
    %cst_27 = arith.constant dense<0.000000e+00> : vector<64x16xf32>
    %27 = tpu.matmul %24, %26, %cst_27 {dimension_numbers = #tpu.dot_dimension_numbers<[1], [0], [0], [1], [0, 0, 1, 1], [], []>} : vector<64x12xbf16>, vector<12x16xbf16>, vector<64x16xf32> -> vector<64x16xf32>
    %28 = arith.addf %21, %27 : vector<64x16xf32>
    %c0_28 = arith.constant 0 : index
    %c0_29 = arith.constant 0 : index
    %29 = vector.load %arg3[%c0_28, %c0_29] : memref<1x16xf32, #tpu.memory_space<vmem>>, vector<1x16xf32>
    %30 = vector.broadcast %29 : vector<1x16xf32> to vector<64x16xf32>
    %31 = arith.addf %28, %30 : vector<64x16xf32>
    %32 = arith.negf %31 : vector<64x16xf32>
    %33 = math.exp %32 : vector<64x16xf32>
    %cst_30 = arith.constant 1.000000e+00 : f32
    %34 = vector.broadcast %cst_30 : f32 to vector<64x16xf32>
    %35 = arith.addf %34, %33 : vector<64x16xf32>
    %36 = arith.divf %34, %35 : vector<64x16xf32>
    %37 = arith.mulf %31, %36 : vector<64x16xf32>
    %38 = arith.truncf %37 : vector<64x16xf32> to vector<64x16xbf16>
    %c0_31 = arith.constant 0 : index
    %c0_32 = arith.constant 0 : index
    %39 = vector.load %arg4[%c0_31, %c0_32] : memref<16x32xbf16, #tpu.memory_space<vmem>>, vector<16x32xbf16>
    %cst_33 = arith.constant dense<0.000000e+00> : vector<64x32xf32>
    %40 = tpu.matmul %38, %39, %cst_33 {dimension_numbers = #tpu.dot_dimension_numbers<[1], [0], [0], [1], [0, 0, 1, 1], [], []>} : vector<64x16xbf16>, vector<16x32xbf16>, vector<64x32xf32> -> vector<64x32xf32>
    %c0_34 = arith.constant 0 : index
    %c0_35 = arith.constant 0 : index
    %41 = vector.load %arg5[%c0_34, %c0_35] : memref<1x32xf32, #tpu.memory_space<vmem>>, vector<1x32xf32>
    %42 = vector.broadcast %41 : vector<1x32xf32> to vector<64x32xf32>
    %43 = arith.addf %40, %42 : vector<64x32xf32>
    %44 = arith.negf %43 : vector<64x32xf32>
    %45 = math.exp %44 : vector<64x32xf32>
    %cst_36 = arith.constant 1.000000e+00 : f32
    %46 = vector.broadcast %cst_36 : f32 to vector<64x32xf32>
    %47 = arith.addf %46, %45 : vector<64x32xf32>
    %48 = arith.divf %46, %47 : vector<64x32xf32>
    %49 = arith.mulf %43, %48 : vector<64x32xf32>
    %cst_37 = arith.constant dense<0.000000e+00> : vector<32xf32>
    %50 = vector.multi_reduction <add>, %49, %cst_37 [0] : vector<64x32xf32> to vector<32xf32>
    %51 = vector.shape_cast %50 : vector<32xf32> to vector<1x32xf32>
    %cst_38 = arith.constant 1.562500e-02 : f32
    %52 = vector.broadcast %cst_38 : f32 to vector<1x32xf32>
    %53 = arith.mulf %51, %52 : vector<1x32xf32>
    %c0_39 = arith.constant 0 : index
    %c0_40 = arith.constant 0 : index
    %54 = vector.load %arg6[%c0_39, %c0_40] : memref<32x5xf32, #tpu.memory_space<vmem>>, vector<32x5xf32>
    %cst_41 = arith.constant dense<0.000000e+00> : vector<1x5xf32>
    %55 = tpu.matmul %53, %54, %cst_41 {dimension_numbers = #tpu.dot_dimension_numbers<[1], [0], [0], [1], [0, 0, 1, 1], [], []>} : vector<1x32xf32>, vector<32x5xf32>, vector<1x5xf32> -> vector<1x5xf32>
    %c0_42 = arith.constant 0 : index
    %c0_43 = arith.constant 0 : index
    %56 = vector.load %arg7[%c0_42, %c0_43] : memref<1x5xf32, #tpu.memory_space<vmem>>, vector<1x5xf32>
    %57 = arith.addf %55, %56 : vector<1x5xf32>
    %c0_44 = arith.constant 0 : index
    %c0_45 = arith.constant 0 : index
    %c0_46 = arith.constant 0 : index
    %58 = vector.load %arg8[%c0_44, %c0_45, %c0_46] : memref<1x1x5xf32, #tpu.memory_space<vmem>>, vector<1x1x5xf32>
    %59 = vector.shape_cast %58 : vector<1x1x5xf32> to vector<1x5xf32>
    %60 = vector.shape_cast %57 : vector<1x5xf32> to vector<1x1x5xf32>
    tpu.vector_store %arg8[%c0_44, %c0_45, %c0_46], %60 {strides = array<i32>} : memref<1x1x5xf32, #tpu.memory_space<vmem>>, vector<1x1x5xf32>,
    return
  }
  func.func @transform_0(%arg0: i32) -> (i32, i32, i32, i32) {
    %c0_i32 = arith.constant 0 : i32
    %c0_i32_0 = arith.constant 0 : i32
    %c0_i32_1 = arith.constant 0 : i32
    %c0_i32_2 = arith.constant 0 : i32
    return %arg0, %c0_i32, %c0_i32_0, %c0_i32_1 : i32, i32, i32, i32
  }
  func.func @transform_1(%arg0: i32) -> (i32, i32, i32) {
    %c0_i32 = arith.constant 0 : i32
    %c0_i32_0 = arith.constant 0 : i32
    %c0_i32_1 = arith.constant 0 : i32
    %c0_i32_2 = arith.constant 0 : i32
    return %c0_i32, %c0_i32_0, %c0_i32_1 : i32, i32, i32
  }
  func.func @transform_2(%arg0: i32) -> (i32, i32) {
    %c0_i32 = arith.constant 0 : i32
    %c0_i32_0 = arith.constant 0 : i32
    %c0_i32_1 = arith.constant 0 : i32
    return %c0_i32, %c0_i32_0 : i32, i32
  }
  func.func @transform_3(%arg0: i32) -> (i32, i32) {
    %c0_i32 = arith.constant 0 : i32
    %c0_i32_0 = arith.constant 0 : i32
    %c0_i32_1 = arith.constant 0 : i32
    return %c0_i32, %c0_i32_0 : i32, i32
  }
  func.func @transform_4(%arg0: i32) -> (i32, i32) {
    %c0_i32 = arith.constant 0 : i32
    %c0_i32_0 = arith.constant 0 : i32
    %c0_i32_1 = arith.constant 0 : i32
    return %c0_i32, %c0_i32_0 : i32, i32
  }
  func.func @transform_5(%arg0: i32) -> (i32, i32) {
    %c0_i32 = arith.constant 0 : i32
    %c0_i32_0 = arith.constant 0 : i32
    %c0_i32_1 = arith.constant 0 : i32
    return %c0_i32, %c0_i32_0 : i32, i32
  }
  func.func @transform_6(%arg0: i32) -> (i32, i32) {
    %c0_i32 = arith.constant 0 : i32
    %c0_i32_0 = arith.constant 0 : i32
    %c0_i32_1 = arith.constant 0 : i32
    return %c0_i32, %c0_i32_0 : i32, i32
  }
  func.func @transform_7(%arg0: i32) -> (i32, i32, i32) {
    %c0_i32 = arith.constant 0 : i32
    %c0_i32_0 = arith.constant 0 : i32
    %c0_i32_1 = arith.constant 0 : i32
    return %arg0, %c0_i32, %c0_i32_0 : i32, i32, i32
  }
}

</mosaic_0001>

<llo_original>
// kernel: enetv2_forward.1
$region0: #{enetv2_forward.1}
  #allocation0 [shape = 'u32[]', space=smem, size = 0x4, offset = 0x4, fixed_abs, tag = 'smem constant byte address 0x4 - core index']
  #allocation1 [shape = 'u32[144,128]{1,0:T(1,128)}', space=vmem, size = 0x12000, scoped, tag = 'internal scratch']
  %s0 = inlined_call_operand.vmem [shape: bf16[2,9,9,12], index: 0, kind: input, shape index: {}]
  %s1 = inlined_call_operand.vmem [shape: bf16[4,12,16], index: 1, kind: input, shape index: {}]
  %s2 = inlined_call_operand.vmem [shape: f32[1,16], index: 2, kind: input, shape index: {}]
  %s3 = inlined_call_operand.vmem [shape: bf16[16,32], index: 3, kind: input, shape index: {}]
  %s4 = inlined_call_operand.vmem [shape: f32[1,32], index: 4, kind: input, shape index: {}]
  %s5 = inlined_call_operand.vmem [shape: f32[32,5], index: 5, kind: input, shape index: {}]
  %s6 = inlined_call_operand.vmem [shape: f32[1,5], index: 6, kind: input, shape index: {}]
  %s7 = inlined_call_operand.hbm [shape: f32[2,1,5], index: 7, kind: output, shape index: {}]
  %s8 = sld [smem:[#allocation0]]
  $region61: #{enetv2_forward.1} parent=0
    _
  %s10 = ssub.s32 1, %s8
  %s11 = scalar_select 0, %s10, %s8
  $region1: #{enetv2_forward.1} parent=0
    #allocation2 [shape = 'u8[1024]{0}', space=vmem, size = 0x400, scoped, tag = 'output window, operand 0']
    #allocation3 [shape = 's32[2]{0}', space=sflag, size = 0x8, scoped, tag = 'scoped memory for enetv2_forward.1']
    %12 = vsyncpa [#allocation3], 0
    %s13 = scalar_lea.sflag [#allocation3], 1
    %14 = vsyncpa %s13, 0
    loop: start=0, step=1, limit=4
    $region2: #{enetv2_forward.1} parent=1 // loop_pre_header
      _
    $region3: #{enetv2_forward.1} parent=1 // loop_header
      %s16 = sphi 0, %s20
      %p17 = scmp.ge.s32.totalorder %s16, 4
      %s26 = sphi 0, %s28
      %s29 = sphi 0, %s26
      %s30 = sphi 0, %s29
      %s46 = sphi 0, %s30
      %s50 = sphi 0, %s50
      %s52 = sphi 0, %s50
      %s53 = sphi 0, %s52
      %s67 = sphi 0, %s53
      %s71 = sphi 0, %s71
      %s73 = sphi 0, %s71
      %s74 = sphi 0, %s73
      %s88 = sphi 0, %s74
      %s92 = sphi 0, %s92
      %s94 = sphi 0, %s92
      %s95 = sphi 0, %s94
      %s109 = sphi 0, %s95
      %s113 = sphi 0, %s113
      %s115 = sphi 0, %s113
      %s116 = sphi 0, %s115
      %s130 = sphi 0, %s116
      %s134 = sphi 0, %s134
      %s136 = sphi 0, %s134
      %s137 = sphi 0, %s136
      %s151 = sphi 0, %s137
      %s155 = sphi 0, %s155
      %s157 = sphi 0, %s155
      %s158 = sphi 0, %s157
      %s172 = sphi 0, %s158
      %s178 = sphi 0, %s180
      %s181 = sphi 0, %s178
      %s182 = sphi 0, %s181
      %s198 = sphi 0, %s182
    $region4: #{enetv2_forward.1} parent=1 // loop_header_branch
      %19 = sbr.rel (%p17) target = $region8
    $region5: #{enetv2_forward.1} parent=1 // loop_body
      %s21 = ssub.s32 %s16, 1
      %s22 = ssub.s32 %s16, 2
      %s23 = sadd.s32 %s16, 1
      %s24 = ssub.s32 %s16, %s23
      %p25 = scmp.eq.s32.totalorder %s24, 0
      %s27 = sadd.s32 %s26, 1
      %s28 = scalar_select %p25, %s26, %s27
      %p31 = pneg %p25
      %p32 = scmp.eq.s32.totalorder %s16, 1
      %p33 = por %p31, %p32
      %p34 = scmp.ne.s32.totalorder %s26, %s29
      %p35 = scmp.eq.s32.totalorder %s16, 0
      %p36 = por %p34, %p35
      %p37 = scmp.ne.s32.totalorder %s26, %s29
      %p38 = scmp.eq.s32.totalorder %s21, 1
      %p39 = por %p37, %p38
      %p40 = scmp.ne.s32.totalorder %s29, %s30
      %p41 = scmp.eq.s32.totalorder %s21, 0
      %p42 = por %p40, %p41
      %p43 = scmp.ne.s32.totalorder %s29, %s30
      %p44 = scmp.eq.s32.totalorder %s22, 1
      %p45 = por %p43, %p44
      %p47 = scmp.ne.s32.totalorder %s30, %s46
      %p48 = scmp.eq.s32.totalorder %s22, 0
      %p49 = por %p47, %p48
      %s51 = sadd.s32 %s50, 1
      %p54 = scmp.eq.s32.totalorder %s16, 1
      %p55 = scmp.ne.s32.totalorder %s50, %s52
      %p56 = scmp.eq.s32.totalorder %s16, 0
      %p57 = por %p55, %p56
      %p58 = scmp.ne.s32.totalorder %s50, %s52
      %p59 = scmp.eq.s32.totalorder %s21, 1
      %p60 = por %p58, %p59
      %p61 = scmp.ne.s32.totalorder %s52, %s53
      %p62 = scmp.eq.s32.totalorder %s21, 0
      %p63 = por %p61, %p62
      %p64 = scmp.ne.s32.totalorder %s52, %s53
      %p65 = scmp.eq.s32.totalorder %s22, 1
      %p66 = por %p64, %p65
      %p68 = scmp.ne.s32.totalorder %s53, %s67
      %p69 = scmp.eq.s32.totalorder %s22, 0
      %p70 = por %p68, %p69
      %s72 = sadd.s32 %s71, 1
      %p75 = scmp.eq.s32.totalorder %s16, 1
      %p76 = scmp.ne.s32.totalorder %s71, %s73
      %p77 = scmp.eq.s32.totalorder %s16, 0
      %p78 = por %p76, %p77
      %p79 = scmp.ne.s32.totalorder %s71, %s73
      %p80 = scmp.eq.s32.totalorder %s21, 1
      %p81 = por %p79, %p80
      %p82 = scmp.ne.s32.totalorder %s73, %s74
      %p83 = scmp.eq.s32.totalorder %s21, 0
      %p84 = por %p82, %p83
      %p85 = scmp.ne.s32.totalorder %s73, %s74
      %p86 = scmp.eq.s32.totalorder %s22, 1
      %p87 = por %p85, %p86
      %p89 = scmp.ne.s32.totalorder %s74, %s88
      %p90 = scmp.eq.s32.totalorder %s22, 0
      %p91 = por %p89, %p90
      %s93 = sadd.s32 %s92, 1
      %p96 = scmp.eq.s32.totalorder %s16, 1
      %p97 = scmp.ne.s32.totalorder %s92, %s94
      %p98 = scmp.eq.s32.totalorder %s16, 0
      %p99 = por %p97, %p98
      %p100 = scmp.ne.s32.totalorder %s92, %s94
      %p101 = scmp.eq.s32.totalorder %s21, 1
      %p102 = por %p100, %p101
      %p103 = scmp.ne.s32.totalorder %s94, %s95
      %p104 = scmp.eq.s32.totalorder %s21, 0
      %p105 = por %p103, %p104
      %p106 = scmp.ne.s32.totalorder %s94, %s95
      %p107 = scmp.eq.s32.totalorder %s22, 1
      %p108 = por %p106, %p107
      %p110 = scmp.ne.s32.totalorder %s95, %s109
      %p111 = scmp.eq.s32.totalorder %s22, 0
      %p112 = por %p110, %p111
      %s114 = sadd.s32 %s113, 1
      %p117 = scmp.eq.s32.totalorder %s16, 1
      %p118 = scmp.ne.s32.totalorder %s113, %s115
      %p119 = scmp.eq.s32.totalorder %s16, 0
      %p120 = por %p118, %p119
      %p121 = scmp.ne.s32.totalorder %s113, %s115
      %p122 = scmp.eq.s32.totalorder %s21, 1
      %p123 = por %p121, %p122
      %p124 = scmp.ne.s32.totalorder %s115, %s116
      %p125 = scmp.eq.s32.totalorder %s21, 0
      %p126 = por %p124, %p125
      %p127 = scmp.ne.s32.totalorder %s115, %s116
      %p128 = scmp.eq.s32.totalorder %s22, 1
      %p129 = por %p127, %p128
      %p131 = scmp.ne.s32.totalorder %s116, %s130
      %p132 = scmp.eq.s32.totalorder %s22, 0
      %p133 = por %p131, %p132
      %s135 = sadd.s32 %s134, 1
      %p138 = scmp.eq.s32.totalorder %s16, 1
      %p139 = scmp.ne.s32.totalorder %s134, %s136
      %p140 = scmp.eq.s32.totalorder %s16, 0
      %p141 = por %p139, %p140
      %p142 = scmp.ne.s32.totalorder %s134, %s136
      %p143 = scmp.eq.s32.totalorder %s21, 1
      %p144 = por %p142, %p143
      %p145 = scmp.ne.s32.totalorder %s136, %s137
      %p146 = scmp.eq.s32.totalorder %s21, 0
      %p147 = por %p145, %p146
      %p148 = scmp.ne.s32.totalorder %s136, %s137
      %p149 = scmp.eq.s32.totalorder %s22, 1
      %p150 = por %p148, %p149
      %p152 = scmp.ne.s32.totalorder %s137, %s151
      %p153 = scmp.eq.s32.totalorder %s22, 0
      %p154 = por %p152, %p153
      %s156 = sadd.s32 %s155, 1
      %p159 = scmp.eq.s32.totalorder %s16, 1
      %p160 = scmp.ne.s32.totalorder %s155, %s157
      %p161 = scmp.eq.s32.totalorder %s16, 0
      %p162 = por %p160, %p161
      %p163 = scmp.ne.s32.totalorder %s155, %s157
      %p164 = scmp.eq.s32.totalorder %s21, 1
      %p165 = por %p163, %p164
      %p166 = scmp.ne.s32.totalorder %s157, %s158
      %p167 = scmp.eq.s32.totalorder %s21, 0
      %p168 = por %p166, %p167
      %p169 = scmp.ne.s32.totalorder %s157, %s158
      %p170 = scmp.eq.s32.totalorder %s22, 1
      %p171 = por %p169, %p170
      %p173 = scmp.ne.s32.totalorder %s158, %s172
      %p174 = scmp.eq.s32.totalorder %s22, 0
      %p175 = por %p173, %p174
      %s176 = ssub.s32 %s16, %s23
      %p177 = scmp.eq.s32.totalorder %s176, 0
      %s179 = sadd.s32 %s178, 1
      %s180 = scalar_select %p177, %s178, %s179
      %p183 = pneg %p177
      %p184 = scmp.eq.s32.totalorder %s16, 1
      %p185 = por %p183, %p184
      %p186 = scmp.ne.s32.totalorder %s178, %s181
      %p187 = scmp.eq.s32.totalorder %s16, 0
      %p188 = por %p186, %p187
      %p189 = scmp.ne.s32.totalorder %s178, %s181
      %p190 = scmp.eq.s32.totalorder %s21, 1
      %p191 = por %p189, %p190
      %p192 = scmp.ne.s32.totalorder %s181, %s182
      %p193 = scmp.eq.s32.totalorder %s21, 0
      %p194 = por %p192, %p193
      %p195 = scmp.ne.s32.totalorder %s181, %s182
      %p196 = scmp.eq.s32.totalorder %s22, 1
      %p197 = por %p195, %p196
      %p199 = scmp.ne.s32.totalorder %s182, %s198
      %p200 = scmp.eq.s32.totalorder %s22, 0
      %p201 = por %p199, %p200
      %p202 = scmp.le.s32.totalorder 1, %s16
      %p203 = scmp.lt.s32.totalorder %s16, 3
      %p204 = pnand %p202, %p203
      %p205 = pneg %p204
      // Predicated region
      $region9: #{enetv2_forward.1} parent=5 // pred_check
        _
      $region10: #{enetv2_forward.1} parent=5 // pred_check_branch
        %207 = sbr.rel (%p204) target = $region12
      $region11: #{enetv2_forward.1} parent=5 // pred_region
        %s208 = ssub.s32 %s16, 1
        // Predicated region
        $region13: #{enetv2_forward.1} parent=11 // pred_check
          %p209 = pneg %p63
        $region14: #{enetv2_forward.1} parent=11 // pred_check_branch
          %211 = sbr.rel (%p209) target = $region16
        $region15: #{enetv2_forward.1} parent=11 // pred_region
          _
        $region16: #{enetv2_forward.1} parent=11 // pred_fallthru
          _
        // Predicated region
        $region17: #{enetv2_forward.1} parent=11 // pred_check
          %p212 = pneg %p84
        $region18: #{enetv2_forward.1} parent=11 // pred_check_branch
          %214 = sbr.rel (%p212) target = $region20
        $region19: #{enetv2_forward.1} parent=11 // pred_region
          _
        $region20: #{enetv2_forward.1} parent=11 // pred_fallthru
          _
        // Predicated region
        $region21: #{enetv2_forward.1} parent=11 // pred_check
          %p215 = pneg %p105
        $region22: #{enetv2_forward.1} parent=11 // pred_check_branch
          %217 = sbr.rel (%p215) target = $region24
        $region23: #{enetv2_forward.1} parent=11 // pred_region
          _
        $region24: #{enetv2_forward.1} parent=11 // pred_fallthru
          _
        // Predicated region
        $region25: #{enetv2_forward.1} parent=11 // pred_check
          %p218 = pneg %p126
        $region26: #{enetv2_forward.1} parent=11 // pred_check_branch
          %220 = sbr.rel (%p218) target = $region28
        $region27: #{enetv2_forward.1} parent=11 // pred_region
          _
        $region28: #{enetv2_forward.1} parent=11 // pred_fallthru
          _
        // Predicated region
        $region29: #{enetv2_forward.1} parent=11 // pred_check
          %p221 = pneg %p147
        $region30: #{enetv2_forward.1} parent=11 // pred_check_branch
          %223 = sbr.rel (%p221) target = $region32
        $region31: #{enetv2_forward.1} parent=11 // pred_region
          _
        $region32: #{enetv2_forward.1} parent=11 // pred_fallthru
          _
        // Predicated region
        $region33: #{enetv2_forward.1} parent=11 // pred_check
          %p224 = pneg %p168
        $region34: #{enetv2_forward.1} parent=11 // pred_check_branch
          %226 = sbr.rel (%p224) target = $region36
        $region35: #{enetv2_forward.1} parent=11 // pred_region
          _
        $region36: #{enetv2_forward.1} parent=11 // pred_fallthru
          _
      $region12: #{enetv2_forward.1} parent=5 // pred_fallthru
        _
      %p227 = scmp.lt.s32.totalorder %s16, 2
      // Predicated region
      $region37: #{enetv2_forward.1} parent=5 // pred_check
        %p228 = pneg %p227
      $region38: #{enetv2_forward.1} parent=5 // pred_check_branch
        %230 = sbr.rel (%p228) target = $region40
      $region39: #{enetv2_forward.1} parent=5 // pred_region
        // Predicated region
        $region41: #{enetv2_forward.1} parent=39 // pred_check
          %p231 = pneg %p36
        $region42: #{enetv2_forward.1} parent=39 // pred_check_branch
          %233 = sbr.rel (%p231) target = $region44
        $region43: #{enetv2_forward.1} parent=39 // pred_region
          %p234 = scmp.lt.s32.totalorder %s16, 1
          %s235 = scalar_select %p234, %s16, 1
          %s236 = smul.addr %s235, 18
          %s237 = smul.addr %s236, 4
          %s238 = scalar_lea.vmem %s0, %s237
        $region44: #{enetv2_forward.1} parent=39 // pred_fallthru
          _
      $region40: #{enetv2_forward.1} parent=5 // pred_fallthru
        _
      %p239 = scmp.le.s32.totalorder 1, %s16
      %p240 = scmp.lt.s32.totalorder %s16, 3
      %p241 = pnand %p239, %p240
      %p242 = pneg %p241
      // Predicated region
      $region45: #{enetv2_forward.1} parent=5 // pred_check
        _
      $region46: #{enetv2_forward.1} parent=5 // pred_check_branch
        %244 = sbr.rel (%p241) target = $region48
      $region47: #{enetv2_forward.1} parent=5 // pred_region
        %s245 = ssub.s32 %s16, 1
        %p246 = scmp.lt.s32.totalorder %s21, 1
        %s247 = scalar_select %p246, %s21, 1
        %s248 = smul.addr %s247, 18
        %s249 = smul.addr %s248, 4
        %s250 = scalar_lea.vmem %s0, %s249
        %p251 = pneg %p42
        %p252 = pneg %p39
        %p253 = pneg %p63
        %p254 = pneg %p60
        %p255 = pneg %p84
        %p256 = pneg %p81
        %p257 = pneg %p105
        %p258 = pneg %p102
        %p259 = pneg %p126
        %p260 = pneg %p123
        %p261 = pneg %p147
        %p262 = pneg %p144
        %p263 = pneg %p168
        %p264 = pneg %p165
        %p265 = pneg %p194
        %p266 = pneg %p191
        %s267 = sand.u32 %s181, 1
        %s268 = scalar_lea.sflag [#allocation3], %s267
        %s269 = sand.u32 %s181, 1
        %s270 = scalar_lea.vmem [#allocation2], %s269
        %p271 = scmp.lt.s32.totalorder %s21, 1
        %s272 = scalar_select %p271, %s21, 1
        %s273 = smul.addr %s272, 18
        %s274 = smul.addr %s273, 4
        %s275 = scalar_lea.vmem %s0, %s274
        %v277 = vld [vmem:[%s275] sm:$0xf]
        %v278 = vld [vmem:[%s275 + $0x8] sm:$0xf]
        %v279 = vld [vmem:[%s275 + $0x10] sm:$0xf]
        %v280 = vld [vmem:[%s275 + $0x18] sm:$0xf]
        %v281 = vld [vmem:[%s275 + $0x20] sm:$0xf]
        %v282 = vld [vmem:[%s275 + $0x28] sm:$0xf]
        %v283 = vld [vmem:[%s275 + $0x30] sm:$0xf]
        %v284 = vld [vmem:[%s275 + $0x38] sm:$0xf]
        %v285 = vld [vmem:[%s1] sm:$0xf]
        %v286 = vld [vmem:[%s1 + $0x4] sm:$0x3]
        %v287 = vld [vmem:[%s275 + $0x4] sm:$0x1]
        %v288 = vld [vmem:[%s275 + $0xc] sm:$0x1]
        %v289 = vld [vmem:[%s275 + $0x14] sm:$0x1]
        %v290 = vld [vmem:[%s275 + $0x1c] sm:$0x1]
        %v291 = vld [vmem:[%s275 + $0x24] sm:$0x1]
        %v292 = vld [vmem:[%s275 + $0x2c] sm:$0x1]
        %v293 = vld [vmem:[%s275 + $0x34] sm:$0x1]
        %v294 = vld [vmem:[%s275 + $0x3c] sm:$0x1]
        %vm295 = vsmask.f32 3328
        %vm296 = vsmask.f32 7440
        %vm297 = vmor %vm295, %vm296
        %v299 = vshrl.u32 %v277, 16
        %v301 = vrot.slane %v299, 4
        %v302 = vshll.u32 %v277, 16
        %v304 = vrot.slane %v302, 5
        %v305 = vor.u32 %v301, %v304
        %v306 = vrot.slane %v305, 4
        %v308 = vshll.u32 %v287, 16
        %v310 = vrot.slane %v308, 5
        %v311 = vsel %vm297, %v306, %v310
        %v313 = vshrl.u32 %v278, 16
        %v315 = vrot.slane %v313, 4
        %v316 = vshll.u32 %v278, 16
        %v318 = vrot.slane %v316, 5
        %v319 = vor.u32 %v315, %v318
        %v320 = vrot.slane %v319, 4
        %v322 = vshll.u32 %v288, 16
        %v324 = vrot.slane %v322, 5
        %v325 = vsel %vm297, %v320, %v324
        %v327 = vshrl.u32 %v279, 16
        %v329 = vrot.slane %v327, 4
        %v330 = vshll.u32 %v279, 16
        %v332 = vrot.slane %v330, 5
        %v333 = vor.u32 %v329, %v332
        %v334 = vrot.slane %v333, 4
        %v336 = vshll.u32 %v289, 16
        %v338 = vrot.slane %v336, 5
        %v339 = vsel %vm297, %v334, %v338
        %v341 = vshrl.u32 %v280, 16
        %v343 = vrot.slane %v341, 4
        %v344 = vshll.u32 %v280, 16
        %v346 = vrot.slane %v344, 5
        %v347 = vor.u32 %v343, %v346
        %v348 = vrot.slane %v347, 4
        %v350 = vshll.u32 %v290, 16
        %v352 = vrot.slane %v350, 5
        %v353 = vsel %vm297, %v348, %v352
        %v355 = vshrl.u32 %v281, 16
        %v357 = vrot.slane %v355, 4
        %v358 = vshll.u32 %v281, 16
        %v360 = vrot.slane %v358, 5
        %v361 = vor.u32 %v357, %v360
        %v362 = vrot.slane %v361, 4
        %v364 = vshll.u32 %v291, 16
        %v366 = vrot.slane %v364, 5
        %v367 = vsel %vm297, %v362, %v366
        %v369 = vshrl.u32 %v282, 16
        %v371 = vrot.slane %v369, 4
        %v372 = vshll.u32 %v282, 16
        %v374 = vrot.slane %v372, 5
        %v375 = vor.u32 %v371, %v374
        %v376 = vrot.slane %v375, 4
        %v378 = vshll.u32 %v292, 16
        %v380 = vrot.slane %v378, 5
        %v381 = vsel %vm297, %v376, %v380
        %v383 = vshrl.u32 %v283, 16
        %v385 = vrot.slane %v383, 4
        %v386 = vshll.u32 %v283, 16
        %v388 = vrot.slane %v386, 5
        %v389 = vor.u32 %v385, %v388
        %v390 = vrot.slane %v389, 4
        %v392 = vshll.u32 %v293, 16
        %v394 = vrot.slane %v392, 5
        %v395 = vsel %vm297, %v390, %v394
        %v397 = vshrl.u32 %v284, 16
        %v399 = vrot.slane %v397, 4
        %v400 = vshll.u32 %v284, 16
        %v402 = vrot.slane %v400, 5
        %v403 = vor.u32 %v399, %v402
        %v404 = vrot.slane %v403, 4
        %v406 = vshll.u32 %v294, 16
        %v408 = vrot.slane %v406, 5
        %v409 = vsel %vm297, %v404, %v408
        %s410 = scalar_lea.vmem %s1, 8
        %v411 = vld [vmem:[%s410] sm:$0xf]
        %v412 = vld [vmem:[%s410 + $0x4] sm:$0x3]
        %v413 = vunpack.c.l.b16 %v311
        %v414 = vunpack.c.l.b16 %v325
        %v415 = vunpack.c.l.b16 %v339
        %v416 = vunpack.c.l.b16 %v353
        %v417 = vunpack.c.l.b16 %v367
        %v418 = vunpack.c.l.b16 %v381
        %v419 = vunpack.c.l.b16 %v395
        %v420 = vunpack.c.l.b16 %v409
        %v421 = vpack.c.b16 %v414, %v413
        %v422 = vpack.c.b16 %v416, %v415
        %v423 = vpack.c.b16 %v418, %v417
        %v424 = vpack.c.b16 %v420, %v419
        %v427 = vunpack.c.l.b16 %v411
        %v428 = vunpack.c.l.b16 %v412
        %v429 = vpack.c.b16 %v428, %v427
        %vm430 = vcmask 97280
        %v432 = vsel %vm430, %v421, 0
        %v435 = vsel %vm430, %v422, 0
        %v438 = vsel %vm430, %v423, 0
        %v441 = vsel %vm430, %v424, 0
        %vm443 = vcmask 1045504
        %v445 = vsel %vm443, %v429, 0
        %447 = vmatprep.subr.bf16.mxu0 0
        %448 = vmatpush1.bf16.msra.mxu0 %v445
        %449 = vmatprep.subr.bf16.mxu0 0
        %450 = vmatpush1.bf16.msra.mxu0 0
        %451 = vmatprep.subr.bf16.mxu0 0
        %452 = vmatpush1.bf16.msra.mxu0 0
        %453 = vmatprep.subr.bf16.mxu0 0
        %454 = vmatpush1.bf16.msra.mxu0 0
        %455 = vmatprep.subr.bf16.mxu0 0
        %456 = vmatpush1.bf16.msra.mxu0 0
        %457 = vmatprep.subr.bf16.mxu0 0
        %458 = vmatpush1.bf16.msra.mxu0 0
        %459 = vmatprep.subr.bf16.mxu0 0
        %460 = vmatpush1.bf16.msra.mxu0 0
        %461 = vmatprep.subr.bf16.mxu0 0
        %462 = vmatpush1.bf16.msra.mxu0 0
        %463 = vmatprep.subr.bf16.mxu0 0
        %464 = vmatpush1.bf16.msra.mxu0 0
        %465 = vmatprep.subr.bf16.mxu0 0
        %466 = vmatpush1.bf16.msra.mxu0 0
        %467 = vmatprep.subr.bf16.mxu0 0
        %468 = vmatpush1.bf16.msra.mxu0 0
        %469 = vmatprep.subr.bf16.mxu0 0
        %470 = vmatpush1.bf16.msra.mxu0 0
        %471 = vmatprep.subr.bf16.mxu0 0
        %472 = vmatpush1.bf16.msra.mxu0 0
        %473 = vmatprep.subr.bf16.mxu0 0
        %474 = vmatpush1.bf16.msra.mxu0 0
        %475 = vmatprep.subr.bf16.mxu0 0
        %476 = vmatpush1.bf16.msra.mxu0 0
        %477 = vmatprep.subr.bf16.mxu0 0
        %478 = vmatpush1.bf16.msra.mxu0 0
        %479 = vmatprep.mubr.bf16.mxu0 0
        %480 = vmatmul.mubr.bf16.gmra.mrb[0].mxu0 %v432
        %v481 = vpop.f32.mrb[0].mxu0
        %v482 = vadd.f32 0.0, %v481
        %v483 = vpop.f32.mrb[0].mxu0
        %v484 = vpop.f32.mrb[0].mxu0
        %v485 = vadd.f32 0.0, %v484
        %v486 = vpop.f32.mrb[0].mxu0
        %487 = vmatprep.mubr.bf16.mxu0 0
        %488 = vmatmul.mubr.bf16.gmra.mrb[0].mxu0 %v435
        %v489 = vpop.f32.mrb[0].mxu0
        %v490 = vadd.f32 0.0, %v489
        %v491 = vpop.f32.mrb[0].mxu0
        %v492 = vpop.f32.mrb[0].mxu0
        %v493 = vadd.f32 0.0, %v492
        %v494 = vpop.f32.mrb[0].mxu0
        %495 = vmatprep.mubr.bf16.mxu0 0
        %496 = vmatmul.mubr.bf16.gmra.mrb[0].mxu0 %v438
        %v497 = vpop.f32.mrb[0].mxu0
        %v498 = vadd.f32 0.0, %v497
        %v499 = vpop.f32.mrb[0].mxu0
        %v500 = vpop.f32.mrb[0].mxu0
        %v501 = vadd.f32 0.0, %v500
        %v502 = vpop.f32.mrb[0].mxu0
        %503 = vmatprep.mubr.bf16.mxu0 0
        %504 = vmatmul.mubr.bf16.gmra.mrb[0].mxu0 %v441
        %v505 = vpop.f32.mrb[0].mxu0
        %v506 = vadd.f32 0.0, %v505
        %v507 = vpop.f32.mrb[0].mxu0
        %v508 = vpop.f32.mrb[0].mxu0
        %v509 = vadd.f32 0.0, %v508
        %v510 = vpop.f32.mrb[0].mxu0
        %511 = vdwg.mxu0
        %v520 = vunpack.c.l.b16 %v277
        %v521 = vunpack.c.l.b16 %v278
        %v522 = vunpack.c.l.b16 %v279
        %v523 = vunpack.c.l.b16 %v280
        %v524 = vunpack.c.l.b16 %v281
        %v525 = vunpack.c.l.b16 %v282
        %v526 = vunpack.c.l.b16 %v283
        %v527 = vunpack.c.l.b16 %v284
        %v528 = vpack.c.b16 %v521, %v520
        %v529 = vpack.c.b16 %v523, %v522
        %v530 = vpack.c.b16 %v525, %v524
        %v531 = vpack.c.b16 %v527, %v526
        %v534 = vunpack.c.l.b16 %v285
        %v535 = vunpack.c.l.b16 %v286
        %v536 = vpack.c.b16 %v535, %v534
        %v538 = vsel %vm430, %v528, 0
        %v541 = vsel %vm430, %v529, 0
        %v544 = vsel %vm430, %v530, 0
        %v547 = vsel %vm430, %v531, 0
        %v550 = vsel %vm443, %v536, 0
        %552 = vmatprep.subr.bf16.mxu0 0
        %553 = vmatpush1.bf16.msra.mxu0 %v550
        %554 = vmatprep.subr.bf16.mxu0 0
        %555 = vmatpush1.bf16.msra.mxu0 0
        %556 = vmatprep.subr.bf16.mxu0 0
        %557 = vmatpush1.bf16.msra.mxu0 0
        %558 = vmatprep.subr.bf16.mxu0 0
        %559 = vmatpush1.bf16.msra.mxu0 0
        %560 = vmatprep.subr.bf16.mxu0 0
        %561 = vmatpush1.bf16.msra.mxu0 0
        %562 = vmatprep.subr.bf16.mxu0 0
        %563 = vmatpush1.bf16.msra.mxu0 0
        %564 = vmatprep.subr.bf16.mxu0 0
        %565 = vmatpush1.bf16.msra.mxu0 0
        %566 = vmatprep.subr.bf16.mxu0 0
        %567 = vmatpush1.bf16.msra.mxu0 0
        %568 = vmatprep.subr.bf16.mxu0 0
        %569 = vmatpush1.bf16.msra.mxu0 0
        %570 = vmatprep.subr.bf16.mxu0 0
        %571 = vmatpush1.bf16.msra.mxu0 0
        %572 = vmatprep.subr.bf16.mxu0 0
        %573 = vmatpush1.bf16.msra.mxu0 0
        %574 = vmatprep.subr.bf16.mxu0 0
        %575 = vmatpush1.bf16.msra.mxu0 0
        %576 = vmatprep.subr.bf16.mxu0 0
        %577 = vmatpush1.bf16.msra.mxu0 0
        %578 = vmatprep.subr.bf16.mxu0 0
        %579 = vmatpush1.bf16.msra.mxu0 0
        %580 = vmatprep.subr.bf16.mxu0 0
        %581 = vmatpush1.bf16.msra.mxu0 0
        %582 = vmatprep.subr.bf16.mxu0 0
        %583 = vmatpush1.bf16.msra.mxu0 0
        %584 = vmatprep.mubr.bf16.mxu0 0
        %585 = vmatmul.mubr.bf16.gmra.mrb[0].mxu0 %v538
        %v586 = vpop.f32.mrb[0].mxu0
        %v587 = vadd.f32 %v482, %v586
        %v588 = vpop.f32.mrb[0].mxu0
        %v589 = vpop.f32.mrb[0].mxu0
        %v590 = vadd.f32 %v485, %v589
        %v591 = vpop.f32.mrb[0].mxu0
        %592 = vmatprep.mubr.bf16.mxu0 0
        %593 = vmatmul.mubr.bf16.gmra.mrb[0].mxu0 %v541
        %v594 = vpop.f32.mrb[0].mxu0
        %v595 = vadd.f32 %v490, %v594
        %v596 = vpop.f32.mrb[0].mxu0
        %v597 = vpop.f32.mrb[0].mxu0
        %v598 = vadd.f32 %v493, %v597
        %v599 = vpop.f32.mrb[0].mxu0
        %600 = vmatprep.mubr.bf16.mxu0 0
        %601 = vmatmul.mubr.bf16.gmra.mrb[0].mxu0 %v544
        %v602 = vpop.f32.mrb[0].mxu0
        %v603 = vadd.f32 %v498, %v602
        %v604 = vpop.f32.mrb[0].mxu0
        %v605 = vpop.f32.mrb[0].mxu0
        %v606 = vadd.f32 %v501, %v605
        %v607 = vpop.f32.mrb[0].mxu0
        %608 = vmatprep.mubr.bf16.mxu0 0
        %609 = vmatmul.mubr.bf16.gmra.mrb[0].mxu0 %v547
        %v610 = vpop.f32.mrb[0].mxu0
        %v611 = vadd.f32 %v506, %v610
        %v612 = vpop.f32.mrb[0].mxu0
        %v613 = vpop.f32.mrb[0].mxu0
        %v614 = vadd.f32 %v509, %v613
        %v615 = vpop.f32.mrb[0].mxu0
        %616 = vdwg.mxu0
        %s617 = scalar_lea.vmem %s275, 8
        %v618 = vld [vmem:[%s617] sm:$0xf]
        %v619 = vld [vmem:[%s617 + $0x8] sm:$0xf]
        %v620 = vld [vmem:[%s617 + $0x10] sm:$0xf]
        %v621 = vld [vmem:[%s617 + $0x18] sm:$0xf]
        %v622 = vld [vmem:[%s617 + $0x20] sm:$0xf]
        %v623 = vld [vmem:[%s617 + $0x28] sm:$0xf]
        %v624 = vld [vmem:[%s617 + $0x30] sm:$0xf]
        %v625 = vld [vmem:[%s617 + $0x38] sm:$0xf]
        %s626 = scalar_lea.vmem %s1, 16
        %v627 = vld [vmem:[%s626] sm:$0xf]
        %v628 = vld [vmem:[%s626 + $0x4] sm:$0x3]
        %v637 = vunpack.c.l.b16 %v618
        %v638 = vunpack.c.l.b16 %v619
        %v639 = vunpack.c.l.b16 %v620
        %v640 = vunpack.c.l.b16 %v621
        %v641 = vunpack.c.l.b16 %v622
        %v642 = vunpack.c.l.b16 %v623
        %v643 = vunpack.c.l.b16 %v624
        %v644 = vunpack.c.l.b16 %v625
        %v645 = vpack.c.b16 %v638, %v637
        %v646 = vpack.c.b16 %v640, %v639
        %v647 = vpack.c.b16 %v642, %v641
        %v648 = vpack.c.b16 %v644, %v643
        %v651 = vunpack.c.l.b16 %v627
        %v652 = vunpack.c.l.b16 %v628
        %v653 = vpack.c.b16 %v652, %v651
        %v655 = vsel %vm430, %v645, 0
        %v658 = vsel %vm430, %v646, 0
        %v661 = vsel %vm430, %v647, 0
        %v664 = vsel %vm430, %v648, 0
        %v667 = vsel %vm443, %v653, 0
        %669 = vmatprep.subr.bf16.mxu0 0
        %670 = vmatpush1.bf16.msra.mxu0 %v667
        %671 = vmatprep.subr.bf16.mxu0 0
        %672 = vmatpush1.bf16.msra.mxu0 0
        %673 = vmatprep.subr.bf16.mxu0 0
        %674 = vmatpush1.bf16.msra.mxu0 0
        %675 = vmatprep.subr.bf16.mxu0 0
        %676 = vmatpush1.bf16.msra.mxu0 0
        %677 = vmatprep.subr.bf16.mxu0 0
        %678 = vmatpush1.bf16.msra.mxu0 0
        %679 = vmatprep.subr.bf16.mxu0 0
        %680 = vmatpush1.bf16.msra.mxu0 0
        %681 = vmatprep.subr.bf16.mxu0 0
        %682 = vmatpush1.bf16.msra.mxu0 0
        %683 = vmatprep.subr.bf16.mxu0 0
        %684 = vmatpush1.bf16.msra.mxu0 0
        %685 = vmatprep.subr.bf16.mxu0 0
        %686 = vmatpush1.bf16.msra.mxu0 0
        %687 = vmatprep.subr.bf16.mxu0 0
        %688 = vmatpush1.bf16.msra.mxu0 0
        %689 = vmatprep.subr.bf16.mxu0 0
        %690 = vmatpush1.bf16.msra.mxu0 0
        %691 = vmatprep.subr.bf16.mxu0 0
        %692 = vmatpush1.bf16.msra.mxu0 0
        %693 = vmatprep.subr.bf16.mxu0 0
        %694 = vmatpush1.bf16.msra.mxu0 0
        %695 = vmatprep.subr.bf16.mxu0 0
        %696 = vmatpush1.bf16.msra.mxu0 0
        %697 = vmatprep.subr.bf16.mxu0 0
        %698 = vmatpush1.bf16.msra.mxu0 0
        %699 = vmatprep.subr.bf16.mxu0 0
        %700 = vmatpush1.bf16.msra.mxu0 0
        %701 = vmatprep.mubr.bf16.mxu0 0
        %702 = vmatmul.mubr.bf16.gmra.mrb[0].mxu0 %v655
        %v703 = vpop.f32.mrb[0].mxu0
        %v704 = vadd.f32 0.0, %v703
        %v705 = vpop.f32.mrb[0].mxu0
        %v706 = vpop.f32.mrb[0].mxu0
        %v707 = vadd.f32 0.0, %v706
        %v708 = vpop.f32.mrb[0].mxu0
        %709 = vmatprep.mubr.bf16.mxu0 0
        %710 = vmatmul.mubr.bf16.gmra.mrb[0].mxu0 %v658
        %v711 = vpop.f32.mrb[0].mxu0
        %v712 = vadd.f32 0.0, %v711
        %v713 = vpop.f32.mrb[0].mxu0
        %v714 = vpop.f32.mrb[0].mxu0
        %v715 = vadd.f32 0.0, %v714
        %v716 = vpop.f32.mrb[0].mxu0
        %717 = vmatprep.mubr.bf16.mxu0 0
        %718 = vmatmul.mubr.bf16.gmra.mrb[0].mxu0 %v661
        %v719 = vpop.f32.mrb[0].mxu0
        %v720 = vadd.f32 0.0, %v719
        %v721 = vpop.f32.mrb[0].mxu0
        %v722 = vpop.f32.mrb[0].mxu0
        %v723 = vadd.f32 0.0, %v722
        %v724 = vpop.f32.mrb[0].mxu0
        %725 = vmatprep.mubr.bf16.mxu0 0
        %726 = vmatmul.mubr.bf16.gmra.mrb[0].mxu0 %v664
        %v727 = vpop.f32.mrb[0].mxu0
        %v728 = vadd.f32 0.0, %v727
        %v729 = vpop.f32.mrb[0].mxu0
        %v730 = vpop.f32.mrb[0].mxu0
        %v731 = vadd.f32 0.0, %v730
        %v732 = vpop.f32.mrb[0].mxu0
        %733 = vdwg.mxu0
        %v734 = vadd.f32 %v587, %v704
        %v735 = vadd.f32 %v590, %v707
        %v736 = vadd.f32 %v595, %v712
        %v737 = vadd.f32 %v598, %v715
        %v738 = vadd.f32 %v603, %v720
        %v739 = vadd.f32 %v606, %v723
        %v740 = vadd.f32 %v611, %v728
        %v741 = vadd.f32 %v614, %v731
        %v742 = vld [vmem:[%s617] sm:$0xf]
        %v743 = vld [vmem:[%s617 + $0x4] sm:$0x1]
        %v744 = vld [vmem:[%s617 + $0x8] sm:$0xf]
        %v745 = vld [vmem:[%s617 + $0xc] sm:$0x1]
        %v746 = vld [vmem:[%s617 + $0x10] sm:$0xf]
        %v747 = vld [vmem:[%s617 + $0x14] sm:$0x1]
        %v748 = vld [vmem:[%s617 + $0x18] sm:$0xf]
        %v749 = vld [vmem:[%s617 + $0x1c] sm:$0x1]
        %v750 = vld [vmem:[%s617 + $0x20] sm:$0xf]
        %v751 = vld [vmem:[%s617 + $0x24] sm:$0x1]
        %v752 = vld [vmem:[%s617 + $0x28] sm:$0xf]
        %v753 = vld [vmem:[%s617 + $0x2c] sm:$0x1]
        %v754 = vld [vmem:[%s617 + $0x30] sm:$0xf]
        %v755 = vld [vmem:[%s617 + $0x34] sm:$0x1]
        %v756 = vld [vmem:[%s617 + $0x38] sm:$0xf]
        %v757 = vld [vmem:[%s617 + $0x3c] sm:$0x1]
        %v759 = vshrl.u32 %v742, 16
        %v761 = vrot.slane %v759, 4
        %v762 = vshll.u32 %v742, 16
        %v764 = vrot.slane %v762, 5
        %v765 = vor.u32 %v761, %v764
        %v766 = vrot.slane %v765, 4
        %v768 = vshll.u32 %v743, 16
        %v770 = vrot.slane %v768, 5
        %v771 = vsel %vm297, %v766, %v770
        %v773 = vshrl.u32 %v744, 16
        %v775 = vrot.slane %v773, 4
        %v776 = vshll.u32 %v744, 16
        %v778 = vrot.slane %v776, 5
        %v779 = vor.u32 %v775, %v778
        %v780 = vrot.slane %v779, 4
        %v782 = vshll.u32 %v745, 16
        %v784 = vrot.slane %v782, 5
        %v785 = vsel %vm297, %v780, %v784
        %v787 = vshrl.u32 %v746, 16
        %v789 = vrot.slane %v787, 4
        %v790 = vshll.u32 %v746, 16
        %v792 = vrot.slane %v790, 5
        %v793 = vor.u32 %v789, %v792
        %v794 = vrot.slane %v793, 4
        %v796 = vshll.u32 %v747, 16
        %v798 = vrot.slane %v796, 5
        %v799 = vsel %vm297, %v794, %v798
        %v801 = vshrl.u32 %v748, 16
        %v803 = vrot.slane %v801, 4
        %v804 = vshll.u32 %v748, 16
        %v806 = vrot.slane %v804, 5
        %v807 = vor.u32 %v803, %v806
        %v808 = vrot.slane %v807, 4
        %v810 = vshll.u32 %v749, 16
        %v812 = vrot.slane %v810, 5
        %v813 = vsel %vm297, %v808, %v812
        %v815 = vshrl.u32 %v750, 16
        %v817 = vrot.slane %v815, 4
        %v818 = vshll.u32 %v750, 16
        %v820 = vrot.slane %v818, 5
        %v821 = vor.u32 %v817, %v820
        %v822 = vrot.slane %v821, 4
        %v824 = vshll.u32 %v751, 16
        %v826 = vrot.slane %v824, 5
        %v827 = vsel %vm297, %v822, %v826
        %v829 = vshrl.u32 %v752, 16
        %v831 = vrot.slane %v829, 4
        %v832 = vshll.u32 %v752, 16
        %v834 = vrot.slane %v832, 5
        %v835 = vor.u32 %v831, %v834
        %v836 = vrot.slane %v835, 4
        %v838 = vshll.u32 %v753, 16
        %v840 = vrot.slane %v838, 5
        %v841 = vsel %vm297, %v836, %v840
        %v843 = vshrl.u32 %v754, 16
        %v845 = vrot.slane %v843, 4
        %v846 = vshll.u32 %v754, 16
        %v848 = vrot.slane %v846, 5
        %v849 = vor.u32 %v845, %v848
        %v850 = vrot.slane %v849, 4
        %v852 = vshll.u32 %v755, 16
        %v854 = vrot.slane %v852, 5
        %v855 = vsel %vm297, %v850, %v854
        %v857 = vshrl.u32 %v756, 16
        %v859 = vrot.slane %v857, 4
        %v860 = vshll.u32 %v756, 16
        %v862 = vrot.slane %v860, 5
        %v863 = vor.u32 %v859, %v862
        %v864 = vrot.slane %v863, 4
        %v866 = vshll.u32 %v757, 16
        %v868 = vrot.slane %v866, 5
        %v869 = vsel %vm297, %v864, %v868
        %s870 = scalar_lea.vmem %s1, 24
        %v871 = vld [vmem:[%s870] sm:$0xf]
        %v872 = vld [vmem:[%s870 + $0x4] sm:$0x3]
        %v873 = vunpack.c.l.b16 %v771
        %v874 = vunpack.c.l.b16 %v785
        %v875 = vunpack.c.l.b16 %v799
        %v876 = vunpack.c.l.b16 %v813
        %v877 = vunpack.c.l.b16 %v827
        %v878 = vunpack.c.l.b16 %v841
        %v879 = vunpack.c.l.b16 %v855
        %v880 = vunpack.c.l.b16 %v869
        %v881 = vpack.c.b16 %v874, %v873
        %v882 = vpack.c.b16 %v876, %v875
        %v883 = vpack.c.b16 %v878, %v877
        %v884 = vpack.c.b16 %v880, %v879
        %v887 = vunpack.c.l.b16 %v871
        %v888 = vunpack.c.l.b16 %v872
        %v889 = vpack.c.b16 %v888, %v887
        %v891 = vsel %vm430, %v881, 0
        %v894 = vsel %vm430, %v882, 0
        %v897 = vsel %vm430, %v883, 0
        %v900 = vsel %vm430, %v884, 0
        %v903 = vsel %vm443, %v889, 0
        %905 = vmatprep.subr.bf16.mxu0 0
        %906 = vmatpush1.bf16.msra.mxu0 %v903
        %907 = vmatprep.subr.bf16.mxu0 0
        %908 = vmatpush1.bf16.msra.mxu0 0
        %909 = vmatprep.subr.bf16.mxu0 0
        %910 = vmatpush1.bf16.msra.mxu0 0
        %911 = vmatprep.subr.bf16.mxu0 0
        %912 = vmatpush1.bf16.msra.mxu0 0
        %913 = vmatprep.subr.bf16.mxu0 0
        %914 = vmatpush1.bf16.msra.mxu0 0
        %915 = vmatprep.subr.bf16.mxu0 0
        %916 = vmatpush1.bf16.msra.mxu0 0
        %917 = vmatprep.subr.bf16.mxu0 0
        %918 = vmatpush1.bf16.msra.mxu0 0
        %919 = vmatprep.subr.bf16.mxu0 0
        %920 = vmatpush1.bf16.msra.mxu0 0
        %921 = vmatprep.subr.bf16.mxu0 0
        %922 = vmatpush1.bf16.msra.mxu0 0
        %923 = vmatprep.subr.bf16.mxu0 0
        %924 = vmatpush1.bf16.msra.mxu0 0
        %925 = vmatprep.subr.bf16.mxu0 0
        %926 = vmatpush1.bf16.msra.mxu0 0
        %927 = vmatprep.subr.bf16.mxu0 0
        %928 = vmatpush1.bf16.msra.mxu0 0
        %929 = vmatprep.subr.bf16.mxu0 0
        %930 = vmatpush1.bf16.msra.mxu0 0
        %931 = vmatprep.subr.bf16.mxu0 0
        %932 = vmatpush1.bf16.msra.mxu0 0
        %933 = vmatprep.subr.bf16.mxu0 0
        %934 = vmatpush1.bf16.msra.mxu0 0
        %935 = vmatprep.subr.bf16.mxu0 0
        %936 = vmatpush1.bf16.msra.mxu0 0
        %937 = vmatprep.mubr.bf16.mxu0 0
        %938 = vmatmul.mubr.bf16.gmra.mrb[0].mxu0 %v891
        %v939 = vpop.f32.mrb[0].mxu0
        %v940 = vadd.f32 0.0, %v939
        %v941 = vpop.f32.mrb[0].mxu0
        %v942 = vpop.f32.mrb[0].mxu0
        %v943 = vadd.f32 0.0, %v942
        %v944 = vpop.f32.mrb[0].mxu0
        %945 = vmatprep.mubr.bf16.mxu0 0
        %946 = vmatmul.mubr.bf16.gmra.mrb[0].mxu0 %v894
        %v947 = vpop.f32.mrb[0].mxu0
        %v948 = vadd.f32 0.0, %v947
        %v949 = vpop.f32.mrb[0].mxu0
        %v950 = vpop.f32.mrb[0].mxu0
        %v951 = vadd.f32 0.0, %v950
        %v952 = vpop.f32.mrb[0].mxu0
        %953 = vmatprep.mubr.bf16.mxu0 0
        %954 = vmatmul.mubr.bf16.gmra.mrb[0].mxu0 %v897
        %v955 = vpop.f32.mrb[0].mxu0
        %v956 = vadd.f32 0.0, %v955
        %v957 = vpop.f32.mrb[0].mxu0
        %v958 = vpop.f32.mrb[0].mxu0
        %v959 = vadd.f32 0.0, %v958
        %v960 = vpop.f32.mrb[0].mxu0
        %961 = vmatprep.mubr.bf16.mxu0 0
        %962 = vmatmul.mubr.bf16.gmra.mrb[0].mxu0 %v900
        %v963 = vpop.f32.mrb[0].mxu0
        %v964 = vadd.f32 0.0, %v963
        %v965 = vpop.f32.mrb[0].mxu0
        %v966 = vpop.f32.mrb[0].mxu0
        %v967 = vadd.f32 0.0, %v966
        %v968 = vpop.f32.mrb[0].mxu0
        %969 = vdwg.mxu0
        %v970 = vadd.f32 %v734, %v940
        %v971 = vadd.f32 %v735, %v943
        %v972 = vadd.f32 %v736, %v948
        %v973 = vadd.f32 %v737, %v951
        %v974 = vadd.f32 %v738, %v956
        %v975 = vadd.f32 %v739, %v959
        %v976 = vadd.f32 %v740, %v964
        %v977 = vadd.f32 %v741, %v967
        %v978 = vld [vmem:[%s2] sm:$0x1]
        %v980 = vlaneseq
        %v981 = vshrl.u32 %v980, 7
        %v982 = vsub.s32 0, %v981
        %v983 = vrot.slane %v978, %v982
        %v985 = vadd.f32 %v970, %v983
        %v986 = vadd.f32 %v971, %v983
        %v987 = vadd.f32 %v972, %v983
        %v988 = vadd.f32 %v973, %v983
        %v989 = vadd.f32 %v974, %v983
        %v990 = vadd.f32 %v975, %v983
        %v991 = vadd.f32 %v976, %v983
        %v992 = vadd.f32 %v977, %v983
        %v993 = vxor.u32 %v985, 2147483648
        %v994 = vxor.u32 %v986, 2147483648
        %v995 = vxor.u32 %v987, 2147483648
        %v996 = vxor.u32 %v988, 2147483648
        %v997 = vxor.u32 %v989, 2147483648
        %v998 = vxor.u32 %v990, 2147483648
        %v999 = vxor.u32 %v991, 2147483648
        %v1000 = vxor.u32 %v992, 2147483648
        %v1001 = vmul.f32 %v993, 1.442695
        %v1002 = vpow.pop %v1001
        %v1003 = vmul.f32 %v994, 1.442695
        %v1004 = vpow.pop %v1003
        %v1005 = vmul.f32 %v995, 1.442695
        %v1006 = vpow.pop %v1005
        %v1007 = vmul.f32 %v996, 1.442695
        %v1008 = vpow.pop %v1007
        %v1009 = vmul.f32 %v997, 1.442695
        %v1010 = vpow.pop %v1009
        %v1011 = vmul.f32 %v998, 1.442695
        %v1012 = vpow.pop %v1011
        %v1013 = vmul.f32 %v999, 1.442695
        %v1014 = vpow.pop %v1013
        %v1015 = vmul.f32 %v1000, 1.442695
        %v1016 = vpow.pop %v1015
        %v1017 = vadd.f32 %v1002, 1.0
        %v1018 = vadd.f32 %v1004, 1.0
        %v1019 = vadd.f32 %v1006, 1.0
        %v1020 = vadd.f32 %v1008, 1.0
        %v1021 = vadd.f32 %v1010, 1.0
        %v1022 = vadd.f32 %v1012, 1.0
        %v1023 = vadd.f32 %v1014, 1.0
        %v1024 = vadd.f32 %v1016, 1.0
        %v1025 = vrcp.pop %v1017
        %v1026 = vmul.f32 1.0, %v1025
        %v1027 = vrcp.pop %v1018
        %v1028 = vmul.f32 1.0, %v1027
        %v1029 = vrcp.pop %v1019
        %v1030 = vmul.f32 1.0, %v1029
        %v1031 = vrcp.pop %v1020
        %v1032 = vmul.f32 1.0, %v1031
        %v1033 = vrcp.pop %v1021
        %v1034 = vmul.f32 1.0, %v1033
        %v1035 = vrcp.pop %v1022
        %v1036 = vmul.f32 1.0, %v1035
        %v1037 = vrcp.pop %v1023
        %v1038 = vmul.f32 1.0, %v1037
        %v1039 = vrcp.pop %v1024
        %v1040 = vmul.f32 1.0, %v1039
        %v1041 = vmul.f32 %v985, %v1026
        %v1042 = vmul.f32 %v986, %v1028
        %v1043 = vmul.f32 %v987, %v1030
        %v1044 = vmul.f32 %v988, %v1032
        %v1045 = vmul.f32 %v989, %v1034
        %v1046 = vmul.f32 %v990, %v1036
        %v1047 = vmul.f32 %v991, %v1038
        %v1048 = vmul.f32 %v992, %v1040
        %v1049 = vpack.c.bf16 %v1042, %v1041
        %v1050 = vpack.c.bf16 %v1044, %v1043
        %v1051 = vpack.c.bf16 %v1046, %v1045
        %v1052 = vpack.c.bf16 %v1048, %v1047
        %v1053 = vld [vmem:[%s3] sm:$0xf]
        %v1054 = vld [vmem:[%s3 + $0x4] sm:$0xf]
        %v1055 = vld [vmem:[%s4] sm:$0x1]
        %v1057 = vlaneseq
        %v1058 = vshrl.u32 %v1057, 7
        %v1059 = vsub.s32 0, %v1058
        %v1060 = vrot.slane %v1055, %v1059
        %v1064 = vunpack.c.l.b16 %v1053
        %v1065 = vunpack.c.l.b16 %v1054
        %v1066 = vpack.c.b16 %v1065, %v1064
        %vm1068 = vcmask 130048
        %v1070 = vsel %vm1068, %v1049, 0
        %v1073 = vsel %vm1068, %v1050, 0
        %v1076 = vsel %vm1068, %v1051, 0
        %v1079 = vsel %vm1068, %v1052, 0
        %1081 = vmatprep.subr.bf16.mxu0 0
        %1082 = vmatpush1.bf16.msra.mxu0 %v1066
        %1083 = vmatprep.subr.bf16.mxu0 0
        %1084 = vmatpush1.bf16.msra.mxu0 0
        %1085 = vmatprep.subr.bf16.mxu0 0
        %1086 = vmatpush1.bf16.msra.mxu0 0
        %1087 = vmatprep.subr.bf16.mxu0 0
        %1088 = vmatpush1.bf16.msra.mxu0 0
        %1089 = vmatprep.subr.bf16.mxu0 0
        %1090 = vmatpush1.bf16.msra.mxu0 0
        %1091 = vmatprep.subr.bf16.mxu0 0
        %1092 = vmatpush1.bf16.msra.mxu0 0
        %1093 = vmatprep.subr.bf16.mxu0 0
        %1094 = vmatpush1.bf16.msra.mxu0 0
        %1095 = vmatprep.subr.bf16.mxu0 0
        %1096 = vmatpush1.bf16.msra.mxu0 0
        %1097 = vmatprep.subr.bf16.mxu0 0
        %1098 = vmatpush1.bf16.msra.mxu0 0
        %1099 = vmatprep.subr.bf16.mxu0 0
        %1100 = vmatpush1.bf16.msra.mxu0 0
        %1101 = vmatprep.subr.bf16.mxu0 0
        %1102 = vmatpush1.bf16.msra.mxu0 0
        %1103 = vmatprep.subr.bf16.mxu0 0
        %1104 = vmatpush1.bf16.msra.mxu0 0
        %1105 = vmatprep.subr.bf16.mxu0 0
        %1106 = vmatpush1.bf16.msra.mxu0 0
        %1107 = vmatprep.subr.bf16.mxu0 0
        %1108 = vmatpush1.bf16.msra.mxu0 0
        %1109 = vmatprep.subr.bf16.mxu0 0
        %1110 = vmatpush1.bf16.msra.mxu0 0
        %1111 = vmatprep.subr.bf16.mxu0 0
        %1112 = vmatpush1.bf16.msra.mxu0 0
        %1113 = vmatprep.mubr.bf16.mxu0 0
        %1114 = vmatmul.mubr.bf16.gmra.mrb[0].mxu0 %v1070
        %v1115 = vpop.f32.mrb[0].mxu0
        %v1116 = vadd.f32 %v1060, %v1115
        %v1117 = vpop.f32.mrb[0].mxu0
        %v1118 = vpop.f32.mrb[0].mxu0
        %v1119 = vadd.f32 %v1060, %v1118
        %v1120 = vpop.f32.mrb[0].mxu0
        %1121 = vmatprep.mubr.bf16.mxu0 0
        %1122 = vmatmul.mubr.bf16.gmra.mrb[0].mxu0 %v1073
        %v1123 = vpop.f32.mrb[0].mxu0
        %v1124 = vadd.f32 %v1060, %v1123
        %v1125 = vpop.f32.mrb[0].mxu0
        %v1126 = vpop.f32.mrb[0].mxu0
        %v1127 = vadd.f32 %v1060, %v1126
        %v1128 = vpop.f32.mrb[0].mxu0
        %1129 = vmatprep.mubr.bf16.mxu0 0
        %1130 = vmatmul.mubr.bf16.gmra.mrb[0].mxu0 %v1076
        %v1131 = vpop.f32.mrb[0].mxu0
        %v1132 = vadd.f32 %v1060, %v1131
        %v1133 = vpop.f32.mrb[0].mxu0
        %v1134 = vpop.f32.mrb[0].mxu0
        %v1135 = vadd.f32 %v1060, %v1134
        %v1136 = vpop.f32.mrb[0].mxu0
        %1137 = vmatprep.mubr.bf16.mxu0 0
        %1138 = vmatmul.mubr.bf16.gmra.mrb[0].mxu0 %v1079
        %v1139 = vpop.f32.mrb[0].mxu0
        %v1140 = vadd.f32 %v1060, %v1139
        %v1141 = vpop.f32.mrb[0].mxu0
        %v1142 = vpop.f32.mrb[0].mxu0
        %v1143 = vadd.f32 %v1060, %v1142
        %v1144 = vpop.f32.mrb[0].mxu0
        %1145 = vdwg.mxu0
        %v1146 = vxor.u32 %v1116, 2147483648
        %v1147 = vxor.u32 %v1119, 2147483648
        %v1148 = vxor.u32 %v1124, 2147483648
        %v1149 = vxor.u32 %v1127, 2147483648
        %v1150 = vxor.u32 %v1132, 2147483648
        %v1151 = vxor.u32 %v1135, 2147483648
        %v1152 = vxor.u32 %v1140, 2147483648
        %v1153 = vxor.u32 %v1143, 2147483648
        %v1154 = vmul.f32 %v1146, 1.442695
        %v1155 = vpow.pop %v1154
        %v1156 = vmul.f32 %v1147, 1.442695
        %v1157 = vpow.pop %v1156
        %v1158 = vmul.f32 %v1148, 1.442695
        %v1159 = vpow.pop %v1158
        %v1160 = vmul.f32 %v1149, 1.442695
        %v1161 = vpow.pop %v1160
        %v1162 = vmul.f32 %v1150, 1.442695
        %v1163 = vpow.pop %v1162
        %v1164 = vmul.f32 %v1151, 1.442695
        %v1165 = vpow.pop %v1164
        %v1166 = vmul.f32 %v1152, 1.442695
        %v1167 = vpow.pop %v1166
        %v1168 = vmul.f32 %v1153, 1.442695
        %v1169 = vpow.pop %v1168
        %v1170 = vadd.f32 %v1155, 1.0
        %v1171 = vadd.f32 %v1157, 1.0
        %v1172 = vadd.f32 %v1159, 1.0
        %v1173 = vadd.f32 %v1161, 1.0
        %v1174 = vadd.f32 %v1163, 1.0
        %v1175 = vadd.f32 %v1165, 1.0
        %v1176 = vadd.f32 %v1167, 1.0
        %v1177 = vadd.f32 %v1169, 1.0
        %v1178 = vrcp.pop %v1170
        %v1179 = vmul.f32 1.0, %v1178
        %v1180 = vrcp.pop %v1171
        %v1181 = vmul.f32 1.0, %v1180
        %v1182 = vrcp.pop %v1172
        %v1183 = vmul.f32 1.0, %v1182
        %v1184 = vrcp.pop %v1173
        %v1185 = vmul.f32 1.0, %v1184
        %v1186 = vrcp.pop %v1174
        %v1187 = vmul.f32 1.0, %v1186
        %v1188 = vrcp.pop %v1175
        %v1189 = vmul.f32 1.0, %v1188
        %v1190 = vrcp.pop %v1176
        %v1191 = vmul.f32 1.0, %v1190
        %v1192 = vrcp.pop %v1177
        %v1193 = vmul.f32 1.0, %v1192
        %v1194 = vmul.f32 %v1116, %v1179
        %v1195 = vmul.f32 %v1119, %v1181
        %v1196 = vmul.f32 %v1124, %v1183
        %v1197 = vmul.f32 %v1127, %v1185
        %v1198 = vmul.f32 %v1132, %v1187
        %v1199 = vmul.f32 %v1135, %v1189
        %v1200 = vmul.f32 %v1140, %v1191
        %v1201 = vmul.f32 %v1143, %v1193
        %vm1202 = vcmask 261120
        %v1203 = vsel %vm1202, %v1194, 0.0
        %v1204 = vsel %vm1202, %v1195, 0.0
        %v1205 = vadd.f32 %v1203, %v1204
        %v1206 = vsel %vm1202, %v1196, 0.0
        %v1207 = vadd.f32 %v1205, %v1206
        %v1208 = vsel %vm1202, %v1197, 0.0
        %v1209 = vadd.f32 %v1207, %v1208
        %v1210 = vsel %vm1202, %v1198, 0.0
        %v1211 = vadd.f32 %v1209, %v1210
        %v1212 = vsel %vm1202, %v1199, 0.0
        %v1213 = vadd.f32 %v1211, %v1212
        %v1214 = vsel %vm1202, %v1200, 0.0
        %v1215 = vadd.f32 %v1213, %v1214
        %v1216 = vsel %vm1202, %v1201, 0.0
        %v1217 = vadd.f32 %v1215, %v1216
        %v1218 = vrot.slane %v1217, 4
        %v1219 = vadd.f32 %v1217, %v1218
        %v1220 = vrot.slane %v1219, 2
        %v1221 = vadd.f32 %v1219, %v1220
        %v1222 = vrot.slane %v1221, 1
        %v1223 = vadd.f32 %v1221, %v1222
        %v1224 = vmul.f32 %v1223, 0.015625
        %v1225 = vld [vmem:[%s5] sm:$0xff]
        %v1226 = vld [vmem:[%s5 + $0x8] sm:$0xff]
        %v1227 = vld [vmem:[%s5 + $0x10] sm:$0xff]
        %v1228 = vld [vmem:[%s5 + $0x18] sm:$0xff]
        %v1229 = vld [vmem:[%s6] sm:$0x1]
        %v1231 = vsel %vm1202, %v1224, 0
        %1233 = vmatprep.subr.mxu0 0.0
        %1234 = vmatpush1.msra.mxu0 %v1225
        %1235 = vmatprep.subr.mxu0 0.0
        %1236 = vmatpush1.msra.mxu0 %v1226
        %1237 = vmatprep.subr.mxu0 0.0
        %1238 = vmatpush1.msra.mxu0 %v1227
        %1239 = vmatprep.subr.mxu0 0.0
        %1240 = vmatpush1.msra.mxu0 %v1228
        %1241 = vmatprep.subr.mxu0 0.0
        %1242 = vmatpush1.msra.mxu0 0.0
        %1243 = vmatprep.subr.mxu0 0.0
        %1244 = vmatpush1.msra.mxu0 0.0
        %1245 = vmatprep.subr.mxu0 0.0
        %1246 = vmatpush1.msra.mxu0 0.0
        %1247 = vmatprep.subr.mxu0 0.0
        %1248 = vmatpush1.msra.mxu0 0.0
        %1249 = vmatprep.subr.mxu0 0.0
        %1250 = vmatpush1.msra.mxu0 0.0
        %1251 = vmatprep.subr.mxu0 0.0
        %1252 = vmatpush1.msra.mxu0 0.0
        %1253 = vmatprep.subr.mxu0 0.0
        %1254 = vmatpush1.msra.mxu0 0.0
        %1255 = vmatprep.subr.mxu0 0.0
        %1256 = vmatpush1.msra.mxu0 0.0
        %1257 = vmatprep.subr.mxu0 0.0
        %1258 = vmatpush1.msra.mxu0 0.0
        %1259 = vmatprep.subr.mxu0 0.0
        %1260 = vmatpush1.msra.mxu0 0.0
        %1261 = vmatprep.subr.mxu0 0.0
        %1262 = vmatpush1.msra.mxu0 0.0
        %1263 = vmatprep.subr.mxu0 0.0
        %1264 = vmatpush1.msra.mxu0 0.0
        %1265 = vmatprep.subr.mxu0 0.0
        %1266 = vmatpush1.msra.mxu0 0.0
        %1267 = vmatprep.subr.mxu0 0.0
        %1268 = vmatpush1.msra.mxu0 0.0
        %1269 = vmatprep.subr.mxu0 0.0
        %1270 = vmatpush1.msra.mxu0 0.0
        %1271 = vmatprep.subr.mxu0 0.0
        %1272 = vmatpush1.msra.mxu0 0.0
        %1273 = vmatprep.subr.mxu0 0.0
        %1274 = vmatpush1.msra.mxu0 0.0
        %1275 = vmatprep.subr.mxu0 0.0
        %1276 = vmatpush1.msra.mxu0 0.0
        %1277 = vmatprep.subr.mxu0 0.0
        %1278 = vmatpush1.msra.mxu0 0.0
        %1279 = vmatprep.subr.mxu0 0.0
        %1280 = vmatpush1.msra.mxu0 0.0
        %1281 = vmatprep.subr.mxu0 0.0
        %1282 = vmatpush1.msra.mxu0 0.0
        %1283 = vmatprep.subr.mxu0 0.0
        %1284 = vmatpush1.msra.mxu0 0.0
        %1285 = vmatprep.subr.mxu0 0.0
        %1286 = vmatpush1.msra.mxu0 0.0
        %1287 = vmatprep.subr.mxu0 0.0
        %1288 = vmatpush1.msra.mxu0 0.0
        %1289 = vmatprep.subr.mxu0 0.0
        %1290 = vmatpush1.msra.mxu0 0.0
        %1291 = vmatprep.subr.mxu0 0.0
        %1292 = vmatpush1.msra.mxu0 0.0
        %1293 = vmatprep.subr.mxu0 0.0
        %1294 = vmatpush1.msra.mxu0 0.0
        %1295 = vmatprep.subr.mxu0 0.0
        %1296 = vmatpush1.msra.mxu0 0.0
        %1297 = vmatprep.mubr.f32.mxu0 0.0
        %1298 = vmatmul.mubr.f32.gmra.mrb[0].mxu0 %v1231
        %v1299 = vpop.f32.mrb[0].mxu0
        %v1300 = vadd.f32 %v1229, %v1299
        %v1301 = vpop.f32.mrb[0].mxu0
        %1302 = vdwg.mxu0
        %vm1303 = vcmask 32768
        %1304 = vst.msk [vmem:[%s270] sm:$0x1] %vm1303, %v1300
        %s1305 = sand.u32 %s181, 1
        %s1306 = scalar_lea.sflag [#allocation3], %s1305
        %s1307 = sand.u32 %s181, 1
        %s1308 = scalar_lea.vmem [#allocation2], %s1307
        // Predicated region
        $region49: #{enetv2_forward.1} parent=47 // pred_check
          %p1309 = pneg %p191
        $region50: #{enetv2_forward.1} parent=47 // pred_check_branch
          %1311 = sbr.rel (%p1309) target = $region52
        $region51: #{enetv2_forward.1} parent=47 // pred_region
          %s1313 = ssub.s32 16, 16
          %1314 = vsyncadd %s1306, %s1313
          %s1315 = smul.addr %s21, 16
          %s1316 = scalar_lea.hbm %s7, %s1315
          %s1318 = sshll.u32 %s1308, 4
          %s1319 = int_to_ptr.vmem [resolvable:$true] %s1318
          %1321 = dma.vmem_to_hbm [thread:$0]  %s1319, 16, %s1316, %s1306
        $region52: #{enetv2_forward.1} parent=47 // pred_fallthru
          _
      $region48: #{enetv2_forward.1} parent=5 // pred_fallthru
        _
      %p1322 = scmp.le.s32.totalorder 2, %s16
      // Predicated region
      $region53: #{enetv2_forward.1} parent=5 // pred_check
        %p1323 = pneg %p1322
      $region54: #{enetv2_forward.1} parent=5 // pred_check_branch
        %1325 = sbr.rel (%p1323) target = $region56
      $region55: #{enetv2_forward.1} parent=5 // pred_region
        %s1326 = ssub.s32 %s16, 2
        // Predicated region
        $region57: #{enetv2_forward.1} parent=55 // pred_check
          %p1327 = pneg %p197
        $region58: #{enetv2_forward.1} parent=55 // pred_check_branch
          %1329 = sbr.rel (%p1327) target = $region60
        $region59: #{enetv2_forward.1} parent=55 // pred_region
          %s1330 = sand.u32 %s182, 1
          %s1331 = scalar_lea.sflag [#allocation3], %s1330
          %s1332 = sand.u32 %s182, 1
          %s1333 = scalar_lea.vmem [#allocation2], %s1332
          %1334 = dma.done %s1331, 16
        $region60: #{enetv2_forward.1} parent=55 // pred_fallthru
          _
      $region56: #{enetv2_forward.1} parent=5 // pred_fallthru
        _
    $region6: #{enetv2_forward.1} parent=1 // loop_footer
      %s20 = sadd.s32 1, %s16
    $region7: #{enetv2_forward.1} parent=1 // loop_footer_branch
      %15 = sbr.rel target = $region3
    $region8: #{enetv2_forward.1} parent=1 // loop_exit
      _
    %1335 = vsyncpa [#allocation3], 1
    %s1336 = scalar_lea.sflag [#allocation3], 1
    %1337 = vsyncpa %s1336, 1

</llo_original>
